<compile_context>
chip_gen: v7x
topology: tpu7x:2x2x1
jax: 0.10.0
libtpu: 0.0.40
codegen_flags: <defaults>
</compile_context>

<pallas_src>
import functools

import jax
import jax.numpy as jnp
from jax.experimental import pallas as pl
from jax.experimental.pallas import tpu as pltpu


def _ce2d_kernel(logits_ref, target_ref, weight_ref, out_ref, *,
                 ignore_label, hw):
    # logits_ref: (C, TILE) input dtype (f32/bf16), batch dim squeezed
    # target_ref: (1, TILE) int32
    # weight_ref: (C, 1)   f32 VMEM
    # out_ref   : (2, 128) f32 per-tile partial sums
    t_idx = pl.program_id(1)

    x = logits_ref[...].astype(jnp.float32)              # (C, TILE)
    tgt = target_ref[...]                                 # (1, TILE)
    c_dim, tile = x.shape

    valid = jnp.logical_and(tgt >= 0, tgt != ignore_label)  # (1, TILE)

    # Ragged-tail handling: compiled out entirely when hw % tile == 0.
    # When present it is only a (1,TILE) iota+compare; out-of-range garbage
    # (possibly NaN/inf logits) never reaches the sums because contributions
    # are gated with selects below, not with multiplies.
    if hw % tile != 0:
        lane = jax.lax.broadcasted_iota(jnp.int32, (1, tile), 1)
        in_range = (t_idx * tile + lane) < hw
        valid = jnp.logical_and(valid, in_range)

    # Numerically stable log-sum-exp over the (small) class / sublane axis.
    m = jnp.max(x, axis=0, keepdims=True)                  # (1, TILE)
    lse = jnp.log(jnp.sum(jnp.exp(x - m), axis=0, keepdims=True)) + m

    # One-hot select over the static class axis, shared between the target
    # logit and the per-pixel class weight (no O(C) scalar weight loop).
    cls = jax.lax.broadcasted_iota(jnp.int32, x.shape, 0)  # (C, TILE)
    onehot = cls == tgt                                     # (C, TILE)
    logit_t = jnp.sum(jnp.where(onehot, x, 0.0), axis=0, keepdims=True)
    w_t = jnp.sum(jnp.where(onehot, weight_ref[...], 0.0), axis=0,
                  keepdims=True)                            # (1, TILE)

    nll = lse - logit_t                                     # (1, TILE)

    # NaN-safe accumulation: selects drop any garbage from ragged tails or
    # out-of-range labels (which also get weight 0 via the empty one-hot).
    num_partial = jnp.sum(jnp.where(valid, nll * w_t, 0.0))
    den_partial = jnp.sum(jnp.where(valid, w_t, 0.0))

    # Lane-dense (2,128) output block; partials land in lane 0 of each row.
    row = jax.lax.broadcasted_iota(jnp.int32, (2, 128), 0)
    col = jax.lax.broadcasted_iota(jnp.int32, (2, 128), 1)
    vals = jnp.where(row == 0, num_partial, den_partial)
    out_ref[...] = jnp.where(col == 0, vals, 0.0)


def cross_entropy_2d(predict, target, weight=None, *, reduction="mean",
                     ignore_label=255, tile_hw=None):
    """predict: (n, c, h, w) float (f32 or bf16); target: (n, h, w) int labels."""
    n, c, h, w = predict.shape
    assert target.shape == (n, h, w)
    hw = h * w

    # Free reshapes only -- no transpose, no pad, no dtype upcast in HBM.
    logits = jnp.reshape(predict, (n, c, hw))
    tgt = jnp.reshape(target, (n, 1, hw)).astype(jnp.int32)

    if weight is None:
        weight_arr = jnp.ones((c, 1), jnp.float32)
    else:
        weight_arr = jnp.asarray(weight, jnp.float32).reshape(c, 1)

    lanes = pl.cdiv(hw, 128)  # number of 128-pixel lane groups per batch row
    if tile_hw is None:
        # ~20 MiB total VMEM budget per step: 2x double-buffered input blocks
        # plus ~2x-the-f32-logits-block of in-kernel temporaries.  Safe under
        # the 32 MiB scoped limit on v5e/v6e and v7x's 64 MiB physical VMEM,
        # and large enough (multi-MiB blocks) to sit near the HBM roofline.
        isz = jnp.dtype(predict.dtype).itemsize
        per_pix = 2 * (c * isz + 4) + 2 * c * 4
        max_chunks = max(1, (20 * 1024 * 1024) // (128 * per_pix))
        chunks = min(lanes, max_chunks)
        # Megacore: keep a parallel grid axis of extent >= 2 whenever possible
        # so v7x's second TensorCore is never idle (e.g. n == 1 eval shapes).
        if n * pl.cdiv(lanes, chunks) < 2 and lanes >= 2:
            chunks = pl.cdiv(lanes, 2)
        tile_hw = chunks * 128

    num_tiles = pl.cdiv(hw, tile_hw)
    grid = (n, num_tiles)

    kernel = functools.partial(_ce2d_kernel, ignore_label=ignore_label, hw=hw)

    partials = pl.pallas_call(
        kernel,
        out_shape=jax.ShapeDtypeStruct((n, num_tiles, 2, 128), jnp.float32),
        grid=grid,
        in_specs=[
            pl.BlockSpec((pl.Squeezed(), c, tile_hw), lambda b, t: (b, 0, t)),
            pl.BlockSpec((pl.Squeezed(), 1, tile_hw), lambda b, t: (b, 0, t)),
            pl.BlockSpec((c, 1), lambda b, t: (0, 0)),
        ],
        out_specs=pl.BlockSpec((pl.Squeezed(), pl.Squeezed(), 2, 128),
                               lambda b, t: (b, t, 0, 0)),
        compiler_params=pltpu.CompilerParams(
            dimension_semantics=("parallel", "parallel"),
            vmem_limit_bytes=32 * 1024 * 1024),
    )(logits, tgt, weight_arr)

    # Tiny final reduction over per-tile partials in plain JAX.
    num_s = jnp.sum(partials[:, :, 0, :])
    den_s = jnp.sum(partials[:, :, 1, :])

    if reduction == "mean":
        # PyTorch module returns zeros(1) when no valid targets exist; use a
        # safe denominator so the unselected division never produces inf/NaN.
        safe_den = jnp.maximum(den_s, jnp.float32(1e-12))
        return jnp.where(den_s > 0, num_s / safe_den, jnp.float32(0.0))
    elif reduction == "sum":
        return num_s   # already 0 when there are no valid targets
    else:
        # TODO(synk): reduction='none' needs a dynamic-shape masked select of
        # per-pixel losses; not expressible as a static-shape Pallas output.
        raise NotImplementedError(reduction)


def _reference(predict, target, weight=None, ignore_label=255):
    n, c, h, w = predict.shape
    logits = jnp.transpose(predict, (0, 2, 3, 1)).reshape(-1, c)
    logits = logits.astype(jnp.float32)
    t = target.reshape(-1).astype(jnp.int32)
    valid = jnp.logical_and(t >= 0, t != ignore_label)
    logp = jax.nn.log_softmax(logits, axis=-1)
    tc = jnp.clip(t, 0, c - 1)
    nll = -jnp.take_along_axis(logp, tc[:, None], axis=-1)[:, 0]
    wt = jnp.ones((c,), jnp.float32) if weight is None else jnp.asarray(
        weight, jnp.float32)
    w_pix = wt[tc]
    vf = valid.astype(jnp.float32)
    num = jnp.sum(nll * w_pix * vf)
    den = jnp.sum(w_pix * vf)
    return jnp.where(den > 0, num / jnp.maximum(den, 1e-12), 0.0)


if __name__ == "__main__":
    key = jax.random.PRNGKey(0)
    k1, k2, k3, k4, k5 = jax.random.split(key, 5)

    # Case 1: small NCHW batch, hw a multiple of 128 (mask-free fast path).
    n, c, h, w = 2, 4, 16, 16
    predict = jax.random.normal(k1, (n, c, h, w), dtype=jnp.float32)
    target = jax.random.randint(k2, (n, h, w), 0, c, dtype=jnp.int32)
    ignore_mask = jax.random.bernoulli(k3, 0.2, (n, h, w))
    target = jnp.where(ignore_mask, jnp.int32(255), target)

    loss = jax.block_until_ready(cross_entropy_2d(predict, target))
    ref = _reference(predict, target)
    assert jnp.allclose(loss, ref, rtol=1e-5, atol=1e-5), (loss, ref)

    # Case 2: per-class weights (exercises the shared one-hot weight path).
    wvec = jnp.array([1.0, 2.0, 0.5, 1.5], jnp.float32)
    loss_w = jax.block_until_ready(cross_entropy_2d(predict, target, wvec))
    ref_w = _reference(predict, target, wvec)
    assert jnp.allclose(loss_w, ref_w, rtol=1e-5, atol=1e-5), (loss_w, ref_w)

    # Case 3: n=1, ragged hw (144 pixels) with bf16 logits -- exercises the
    # megacore tile split, the ragged-tail mask and the bf16 streaming path.
    n2, c2, h2, w2 = 1, 4, 12, 12
    predict2 = jax.random.normal(k4, (n2, c2, h2, w2), dtype=jnp.bfloat16)
    target2 = jax.random.randint(k5, (n2, h2, w2), 0, c2, dtype=jnp.int32)
    loss2 = jax.block_until_ready(cross_entropy_2d(predict2, target2))
    ref2 = _reference(predict2, target2)
    assert jnp.allclose(loss2, ref2, rtol=1e-4, atol=1e-4), (loss2, ref2)

    print("KERNEL_OK")
</pallas_src>

<mosaic_0001>
module attributes {stable_mosaic.version = 11 : i64} {
  func.func @_ce2d_kernel(%arg0: i32, %arg1: i32, %arg2: memref<1x4x256xf32, #tpu.memory_space<vmem>>, %arg3: memref<1x1x256xi32, #tpu.memory_space<vmem>>, %arg4: memref<4x1xf32, #tpu.memory_space<vmem>>, %arg5: memref<1x1x2x128xf32, #tpu.memory_space<vmem>>) attributes {dimension_semantics = [#tpu.dimension_semantics<parallel>, #tpu.dimension_semantics<parallel>], iteration_bounds = array<i64: 2, 1>, scalar_prefetch = 0 : i64, scratch_operands = 0 : i64, tpu.core_type = #tpu.core_type<tc>, window_params = [{transform_indices = @transform_0, window_bounds = array<i64: 1, 4, 256>}, {transform_indices = @transform_1, window_bounds = array<i64: 1, 1, 256>}, {pipeline_mode = #tpu.pipeline_mode<synchronous>, transform_indices = @transform_2, window_bounds = array<i64: 4, 1>}, {transform_indices = @transform_3, window_bounds = array<i64: 1, 1, 2, 128>}]} {
    %c0 = arith.constant 0 : index
    %c0_0 = arith.constant 0 : index
    %c0_1 = arith.constant 0 : index
    %0 = vector.load %arg2[%c0, %c0_0, %c0_1] : memref<1x4x256xf32, #tpu.memory_space<vmem>>, vector<1x4x256xf32>
    %1 = vector.shape_cast %0 : vector<1x4x256xf32> to vector<4x256xf32>
    %c0_2 = arith.constant 0 : index
    %c0_3 = arith.constant 0 : index
    %c0_4 = arith.constant 0 : index
    %2 = vector.load %arg3[%c0_2, %c0_3, %c0_4] : memref<1x1x256xi32, #tpu.memory_space<vmem>>, vector<1x1x256xi32>
    %3 = vector.shape_cast %2 : vector<1x1x256xi32> to vector<1x256xi32>
    %c0_i32 = arith.constant 0 : i32
    %4 = vector.broadcast %c0_i32 : i32 to vector<1x256xi32>
    %5 = arith.cmpi sge, %3, %4 : vector<1x256xi32>
    %c255_i32 = arith.constant 255 : i32
    %6 = vector.broadcast %c255_i32 : i32 to vector<1x256xi32>
    %7 = arith.cmpi ne, %3, %6 : vector<1x256xi32>
    %8 = arith.andi %5, %7 : vector<1x256xi1>
    %cst = arith.constant dense<0xFF800000> : vector<256xf32>
    %9 = vector.multi_reduction <maximumf>, %1, %cst [0] : vector<4x256xf32> to vector<256xf32>
    %10 = vector.shape_cast %9 : vector<256xf32> to vector<1x256xf32>
    %11 = vector.broadcast %10 : vector<1x256xf32> to vector<4x256xf32>
    %12 = arith.subf %1, %11 : vector<4x256xf32>
    %13 = math.exp %12 : vector<4x256xf32>
    %cst_5 = arith.constant dense<0.000000e+00> : vector<256xf32>
    %14 = vector.multi_reduction <add>, %13, %cst_5 [0] : vector<4x256xf32> to vector<256xf32>
    %15 = vector.shape_cast %14 : vector<256xf32> to vector<1x256xf32>
    %16 = math.log %15 : vector<1x256xf32>
    %17 = arith.addf %16, %10 : vector<1x256xf32>
    %18 = tpu.iota {dimensions = array<i32: 0>} : vector<4x256xi32>
    %19 = vector.broadcast %3 : vector<1x256xi32> to vector<4x256xi32>
    %20 = arith.cmpi eq, %18, %19 : vector<4x256xi32>
    %cst_6 = arith.constant 0.000000e+00 : f32
    %21 = vector.broadcast %cst_6 : f32 to vector<4x256xf32>
    %22 = arith.select %20, %1, %21 : vector<4x256xi1>, vector<4x256xf32>
    %cst_7 = arith.constant dense<0.000000e+00> : vector<256xf32>
    %23 = vector.multi_reduction <add>, %22, %cst_7 [0] : vector<4x256xf32> to vector<256xf32>
    %24 = vector.shape_cast %23 : vector<256xf32> to vector<1x256xf32>
    %c0_8 = arith.constant 0 : index
    %c0_9 = arith.constant 0 : index
    %25 = vector.load %arg4[%c0_8, %c0_9] : memref<4x1xf32, #tpu.memory_space<vmem>>, vector<4x1xf32>
    %cst_10 = arith.constant 0.000000e+00 : f32
    %26 = vector.shape_cast %25 : vector<4x1xf32> to vector<4x1xf32>
    %27 = vector.broadcast %26 : vector<4x1xf32> to vector<4x256xf32>
    %28 = vector.broadcast %cst_10 : f32 to vector<4x256xf32>
    %29 = arith.select %20, %27, %28 : vector<4x256xi1>, vector<4x256xf32>
    %cst_11 = arith.constant dense<0.000000e+00> : vector<256xf32>
    %30 = vector.multi_reduction <add>, %29, %cst_11 [0] : vector<4x256xf32> to vector<256xf32>
    %31 = vector.shape_cast %30 : vector<256xf32> to vector<1x256xf32>
    %32 = arith.subf %17, %24 : vector<1x256xf32>
    %33 = arith.mulf %32, %31 : vector<1x256xf32>
    %cst_12 = arith.constant 0.000000e+00 : f32
    %34 = vector.broadcast %cst_12 : f32 to vector<1x256xf32>
    %35 = arith.select %8, %33, %34 : vector<1x256xi1>, vector<1x256xf32>
    %36 = vector.shape_cast %35 : vector<1x256xf32> to vector<1x1x256xf32>
    %cst_13 = arith.constant dense<0.000000e+00> : vector<1xf32>
    %37 = vector.multi_reduction <add>, %36, %cst_13 [1, 2] : vector<1x1x256xf32> to vector<1xf32>
    %38 = vector.shape_cast %37 : vector<1xf32> to vector<1x1x1xf32>
    %39 = vector.extract %38[0, 0, 0] : f32 from vector<1x1x1xf32>
    %cst_14 = arith.constant 0.000000e+00 : f32
    %40 = vector.broadcast %cst_14 : f32 to vector<1x256xf32>
    %41 = arith.select %8, %31, %40 : vector<1x256xi1>, vector<1x256xf32>
    %42 = vector.shape_cast %41 : vector<1x256xf32> to vector<1x1x256xf32>
    %cst_15 = arith.constant dense<0.000000e+00> : vector<1xf32>
    %43 = vector.multi_reduction <add>, %42, %cst_15 [1, 2] : vector<1x1x256xf32> to vector<1xf32>
    %44 = vector.shape_cast %43 : vector<1xf32> to vector<1x1x1xf32>
    %45 = vector.extract %44[0, 0, 0] : f32 from vector<1x1x1xf32>
    %46 = tpu.iota {dimensions = array<i32: 0>} : vector<2x128xi32>
    %47 = tpu.iota {dimensions = array<i32: 1>} : vector<2x128xi32>
    %c0_i32_16 = arith.constant 0 : i32
    %48 = vector.broadcast %c0_i32_16 : i32 to vector<2x128xi32>
    %49 = arith.cmpi eq, %46, %48 : vector<2x128xi32>
    %50 = vector.broadcast %39 : f32 to vector<2x128xf32>
    %51 = vector.broadcast %45 : f32 to vector<2x128xf32>
    %52 = arith.select %49, %50, %51 : vector<2x128xi1>, vector<2x128xf32>
    %c0_i32_17 = arith.constant 0 : i32
    %53 = vector.broadcast %c0_i32_17 : i32 to vector<2x128xi32>
    %54 = arith.cmpi eq, %47, %53 : vector<2x128xi32>
    %cst_18 = arith.constant 0.000000e+00 : f32
    %55 = vector.broadcast %cst_18 : f32 to vector<2x128xf32>
    %56 = arith.select %54, %52, %55 : vector<2x128xi1>, vector<2x128xf32>
    %c0_19 = arith.constant 0 : index
    %c0_20 = arith.constant 0 : index
    %c0_21 = arith.constant 0 : index
    %c0_22 = arith.constant 0 : index
    %57 = vector.load %arg5[%c0_19, %c0_20, %c0_21, %c0_22] : memref<1x1x2x128xf32, #tpu.memory_space<vmem>>, vector<1x1x2x128xf32>
    %58 = vector.shape_cast %57 : vector<1x1x2x128xf32> to vector<2x128xf32>
    %59 = vector.shape_cast %56 : vector<2x128xf32> to vector<1x1x2x128xf32>
    tpu.vector_store %arg5[%c0_19, %c0_20, %c0_21, %c0_22], %59 {strides = array<i32>} : memref<1x1x2x128xf32, #tpu.memory_space<vmem>>, vector<1x1x2x128xf32>,
    return
  }
  func.func @transform_0(%arg0: i32, %arg1: i32) -> (i32, i32, i32) {
    %c0_i32 = arith.constant 0 : i32
    %c0_i32_0 = arith.constant 0 : i32
    return %arg0, %c0_i32, %arg1 : i32, i32, i32
  }
  func.func @transform_1(%arg0: i32, %arg1: i32) -> (i32, i32, i32) {
    %c0_i32 = arith.constant 0 : i32
    %c0_i32_0 = arith.constant 0 : i32
    return %arg0, %c0_i32, %arg1 : i32, i32, i32
  }
  func.func @transform_2(%arg0: i32, %arg1: i32) -> (i32, i32) {
    %c0_i32 = arith.constant 0 : i32
    %c0_i32_0 = arith.constant 0 : i32
    %c0_i32_1 = arith.constant 0 : i32
    return %c0_i32, %c0_i32_0 : i32, i32
  }
  func.func @transform_3(%arg0: i32, %arg1: i32) -> (i32, i32, i32, i32) {
    %c0_i32 = arith.constant 0 : i32
    %c0_i32_0 = arith.constant 0 : i32
    %c0_i32_1 = arith.constant 0 : i32
    return %arg0, %arg1, %c0_i32, %c0_i32_0 : i32, i32, i32, i32
  }
}

</mosaic_0001>

<llo_original>
// kernel: tpu_custom_call.1
$region0: #{tpu_custom_call.1}
  #allocation0 [shape = 'u32[]', space=smem, size = 0x4, offset = 0x4, fixed_abs, tag = 'smem constant byte address 0x4 - core index']
  #allocation1 [shape = 'u32[144,128]{1,0:T(1,128)}', space=vmem, size = 0x12000, scoped, tag = 'internal scratch']
  %s0 = inlined_call_operand.hbm [shape: f32[2,4,256], index: 0, kind: input, shape index: {}]
  %s1 = inlined_call_operand.vmem [shape: s32[2,1,256], index: 1, kind: input, shape index: {}]
  %s2 = inlined_call_operand.vmem [shape: f32[4,1], index: 2, kind: input, shape index: {}]
  %s3 = inlined_call_operand.hbm [shape: f32[2,1,2,128], index: 3, kind: output, shape index: {}]
  %s4 = sld [smem:[#allocation0]]
  $region49: #{tpu_custom_call.1} parent=0
    _
  %s6 = ssub.s32 1, %s4
  %s7 = scalar_select 0, %s6, %s4
  $region1: #{tpu_custom_call.1} parent=0
    #allocation2 [shape = 'u8[8192]{0}', space=vmem, size = 0x2000, scoped, tag = 'input window, operand 0']
    #allocation3 [shape = 's32[2]{0}', space=sflag, size = 0x8, scoped, tag = 'scoped memory for tpu_custom_call.1']
    #allocation4 [shape = 's32[2]{0}', space=sflag, size = 0x8, scoped, tag = 'scoped memory for tpu_custom_call.1']
    #allocation5 [shape = 'u8[2048]{0}', space=vmem, size = 0x800, scoped, tag = 'output window, operand 0']
    %8 = vsyncpa [#allocation3], 0
    %s9 = scalar_lea.sflag [#allocation3], 1
    %10 = vsyncpa %s9, 0
    %11 = vsyncpa [#allocation4], 0
    %s12 = scalar_lea.sflag [#allocation4], 1
    %13 = vsyncpa %s12, 0
    loop: start=0, step=1, limit=4
    $region2: #{tpu_custom_call.1} parent=1 // loop_pre_header
      _
    $region3: #{tpu_custom_call.1} parent=1 // loop_header
      %s15 = sphi 0, %s19
      %p16 = scmp.ge.s32.totalorder %s15, 4
      %s22 = sphi 0, %s34
      %s23 = sphi 0, %s30
      %s24 = sphi 0, %s22
      %s25 = sphi 0, %s23
      %s26 = sphi 0, %s24
      %s27 = sphi 0, %s25
      %s39 = sphi 0, %s41
      %s42 = sphi 0, %s39
      %s43 = sphi 0, %s42
      %s59 = sphi 0, %s43
      %s67 = sphi 0, %s69
      %s70 = sphi 0, %s67
      %s71 = sphi 0, %s70
      %s87 = sphi 0, %s71
      %s91 = sphi 0, %s91
      %s93 = sphi 0, %s91
      %s94 = sphi 0, %s93
      %s108 = sphi 0, %s94
      %s116 = sphi 0, %s118
      %s119 = sphi 0, %s116
      %s120 = sphi 0, %s119
      %s136 = sphi 0, %s120
    $region4: #{tpu_custom_call.1} parent=1 // loop_header_branch
      %18 = sbr.rel (%p16) target = $region8
    $region5: #{tpu_custom_call.1} parent=1 // loop_body
      %s20 = ssub.s32 %s15, 1
      %s21 = ssub.s32 %s15, 2
      %s28 = sadd.s32 1, %s23
      %p29 = scmp.ge.s32.totalorder %s28, 1
      %s30 = scalar_select %p29, 0, %s28
      %s31 = sadd.s32 1, %s22
      %s32 = scalar_select %p29, %s31, %s22
      %p33 = scmp.ge.s32.totalorder %s32, 2
      %s34 = scalar_select %p33, 0, %s32
      %s35 = ssub.s32 %s22, %s34
      %s36 = ssub.s32 %s23, %s30
      %s37 = sor.u32 %s35, %s36
      %p38 = scmp.eq.s32.totalorder %s37, 0
      %s40 = sadd.s32 %s39, 1
      %s41 = scalar_select %p38, %s39, %s40
      %p44 = pneg %p38
      %p45 = scmp.eq.s32.totalorder %s15, 1
      %p46 = por %p44, %p45
      %p47 = scmp.ne.s32.totalorder %s39, %s42
      %p48 = scmp.eq.s32.totalorder %s15, 0
      %p49 = por %p47, %p48
      %p50 = scmp.ne.s32.totalorder %s39, %s42
      %p51 = scmp.eq.s32.totalorder %s20, 1
      %p52 = por %p50, %p51
      %p53 = scmp.ne.s32.totalorder %s42, %s43
      %p54 = scmp.eq.s32.totalorder %s20, 0
      %p55 = por %p53, %p54
      %p56 = scmp.ne.s32.totalorder %s42, %s43
      %p57 = scmp.eq.s32.totalorder %s21, 1
      %p58 = por %p56, %p57
      %p60 = scmp.ne.s32.totalorder %s43, %s59
      %p61 = scmp.eq.s32.totalorder %s21, 0
      %p62 = por %p60, %p61
      %s63 = ssub.s32 %s22, %s34
      %s64 = ssub.s32 %s23, %s30
      %s65 = sor.u32 %s63, %s64
      %p66 = scmp.eq.s32.totalorder %s65, 0
      %s68 = sadd.s32 %s67, 1
      %s69 = scalar_select %p66, %s67, %s68
      %p72 = pneg %p66
      %p73 = scmp.eq.s32.totalorder %s15, 1
      %p74 = por %p72, %p73
      %p75 = scmp.ne.s32.totalorder %s67, %s70
      %p76 = scmp.eq.s32.totalorder %s15, 0
      %p77 = por %p75, %p76
      %p78 = scmp.ne.s32.totalorder %s67, %s70
      %p79 = scmp.eq.s32.totalorder %s20, 1
      %p80 = por %p78, %p79
      %p81 = scmp.ne.s32.totalorder %s70, %s71
      %p82 = scmp.eq.s32.totalorder %s20, 0
      %p83 = por %p81, %p82
      %p84 = scmp.ne.s32.totalorder %s70, %s71
      %p85 = scmp.eq.s32.totalorder %s21, 1
      %p86 = por %p84, %p85
      %p88 = scmp.ne.s32.totalorder %s71, %s87
      %p89 = scmp.eq.s32.totalorder %s21, 0
      %p90 = por %p88, %p89
      %s92 = sadd.s32 %s91, 1
      %p95 = scmp.eq.s32.totalorder %s15, 1
      %p96 = scmp.ne.s32.totalorder %s91, %s93
      %p97 = scmp.eq.s32.totalorder %s15, 0
      %p98 = por %p96, %p97
      %p99 = scmp.ne.s32.totalorder %s91, %s93
      %p100 = scmp.eq.s32.totalorder %s20, 1
      %p101 = por %p99, %p100
      %p102 = scmp.ne.s32.totalorder %s93, %s94
      %p103 = scmp.eq.s32.totalorder %s20, 0
      %p104 = por %p102, %p103
      %p105 = scmp.ne.s32.totalorder %s93, %s94
      %p106 = scmp.eq.s32.totalorder %s21, 1
      %p107 = por %p105, %p106
      %p109 = scmp.ne.s32.totalorder %s94, %s108
      %p110 = scmp.eq.s32.totalorder %s21, 0
      %p111 = por %p109, %p110
      %s112 = ssub.s32 %s22, %s34
      %s113 = ssub.s32 %s23, %s30
      %s114 = sor.u32 %s112, %s113
      %p115 = scmp.eq.s32.totalorder %s114, 0
      %s117 = sadd.s32 %s116, 1
      %s118 = scalar_select %p115, %s116, %s117
      %p121 = pneg %p115
      %p122 = scmp.eq.s32.totalorder %s15, 1
      %p123 = por %p121, %p122
      %p124 = scmp.ne.s32.totalorder %s116, %s119
      %p125 = scmp.eq.s32.totalorder %s15, 0
      %p126 = por %p124, %p125
      %p127 = scmp.ne.s32.totalorder %s116, %s119
      %p128 = scmp.eq.s32.totalorder %s20, 1
      %p129 = por %p127, %p128
      %p130 = scmp.ne.s32.totalorder %s119, %s120
      %p131 = scmp.eq.s32.totalorder %s20, 0
      %p132 = por %p130, %p131
      %p133 = scmp.ne.s32.totalorder %s119, %s120
      %p134 = scmp.eq.s32.totalorder %s21, 1
      %p135 = por %p133, %p134
      %p137 = scmp.ne.s32.totalorder %s120, %s136
      %p138 = scmp.eq.s32.totalorder %s21, 0
      %p139 = por %p137, %p138
      %p140 = scmp.le.s32.totalorder 1, %s15
      %p141 = scmp.lt.s32.totalorder %s15, 3
      %p142 = pnand %p140, %p141
      %p143 = pneg %p142
      // Predicated region
      $region9: #{tpu_custom_call.1} parent=5 // pred_check
        _
      $region10: #{tpu_custom_call.1} parent=5 // pred_check_branch
        %145 = sbr.rel (%p142) target = $region12
      $region11: #{tpu_custom_call.1} parent=5 // pred_region
        %s146 = ssub.s32 %s15, 1
        // Predicated region
        $region13: #{tpu_custom_call.1} parent=11 // pred_check
          %p147 = pneg %p104
        $region14: #{tpu_custom_call.1} parent=11 // pred_check_branch
          %149 = sbr.rel (%p147) target = $region16
        $region15: #{tpu_custom_call.1} parent=11 // pred_region
          _
        $region16: #{tpu_custom_call.1} parent=11 // pred_fallthru
          _
      $region12: #{tpu_custom_call.1} parent=5 // pred_fallthru
        _
      %p150 = scmp.lt.s32.totalorder %s15, 2
      // Predicated region
      $region17: #{tpu_custom_call.1} parent=5 // pred_check
        %p151 = pneg %p150
      $region18: #{tpu_custom_call.1} parent=5 // pred_check_branch
        %153 = sbr.rel (%p151) target = $region20
      $region19: #{tpu_custom_call.1} parent=5 // pred_region
        // Predicated region
        $region21: #{tpu_custom_call.1} parent=19 // pred_check
          %p154 = pneg %p49
        $region22: #{tpu_custom_call.1} parent=19 // pred_check_branch
          %156 = sbr.rel (%p154) target = $region24
        $region23: #{tpu_custom_call.1} parent=19 // pred_region
          %s157 = sand.u32 %s39, 1
          %s158 = scalar_lea.sflag [#allocation3], %s157
          %s159 = sand.u32 %s39, 1
          %s160 = smul.addr %s159, 8
          %s161 = scalar_lea.vmem [#allocation2], %s160
          %s162 = smul.u32 2, %s23
          %s164 = ssub.s32 128, 128
          %165 = vsyncadd %s158, %s164
          %s166 = smul.addr %s22, 2
          %s167 = sadd.s32 %s162, %s166
          %s168 = smul.addr %s167, 64
          %s169 = scalar_lea.hbm %s0, %s168
          %s171 = sshll.u32 %s161, 4
          %s172 = int_to_ptr.vmem [resolvable:$true] %s171
          %174 = dma.hbm_to_vmem [thread:$0]  %s169, 128, %s172, %s158
        $region24: #{tpu_custom_call.1} parent=19 // pred_fallthru
          _
        // Predicated region
        $region25: #{tpu_custom_call.1} parent=19 // pred_check
          %p175 = pneg %p77
        $region26: #{tpu_custom_call.1} parent=19 // pred_check_branch
          %177 = sbr.rel (%p175) target = $region28
        $region27: #{tpu_custom_call.1} parent=19 // pred_region
          %s178 = smul.u32 2, %s23
          %p179 = scmp.lt.s32.totalorder %s22, 1
          %s180 = scalar_select %p179, %s22, 1
          %p181 = scmp.lt.s32.totalorder %s178, 1
          %s182 = scalar_select %p181, %s178, 1
          %s183 = smul.addr %s180, 2
          %s184 = sadd.s32 %s182, %s183
          %s185 = scalar_lea.vmem %s1, %s184
          %s186 = smul.u32 2, %s23
        $region28: #{tpu_custom_call.1} parent=19 // pred_fallthru
          _
      $region20: #{tpu_custom_call.1} parent=5 // pred_fallthru
        _
      %p187 = scmp.le.s32.totalorder 1, %s15
      %p188 = scmp.lt.s32.totalorder %s15, 3
      %p189 = pnand %p187, %p188
      %p190 = pneg %p189
      // Predicated region
      $region29: #{tpu_custom_call.1} parent=5 // pred_check
        _
      $region30: #{tpu_custom_call.1} parent=5 // pred_check_branch
        %192 = sbr.rel (%p189) target = $region32
      $region31: #{tpu_custom_call.1} parent=5 // pred_region
        %s193 = ssub.s32 %s15, 1
        %s194 = sand.u32 %s42, 1
        %s195 = scalar_lea.sflag [#allocation3], %s194
        %s196 = sand.u32 %s42, 1
        %s197 = smul.addr %s196, 8
        %s198 = scalar_lea.vmem [#allocation2], %s197
        // Predicated region
        $region33: #{tpu_custom_call.1} parent=31 // pred_check
          %p199 = pneg %p55
        $region34: #{tpu_custom_call.1} parent=31 // pred_check_branch
          %201 = sbr.rel (%p199) target = $region36
        $region35: #{tpu_custom_call.1} parent=31 // pred_region
          %202 = dma.done %s195, 128
        $region36: #{tpu_custom_call.1} parent=31 // pred_fallthru
          _
        %s203 = sand.u32 %s42, 1
        %s204 = scalar_lea.sflag [#allocation3], %s203
        %s205 = sand.u32 %s42, 1
        %s206 = smul.addr %s205, 8
        %s207 = scalar_lea.vmem [#allocation2], %s206
        %p208 = pneg %p55
        %p209 = pneg %p52
        %s210 = smul.u32 2, %s25
        %p211 = scmp.lt.s32.totalorder %s24, 1
        %s212 = scalar_select %p211, %s24, 1
        %p213 = scmp.lt.s32.totalorder %s210, 1
        %s214 = scalar_select %p213, %s210, 1
        %s215 = smul.addr %s212, 2
        %s216 = sadd.s32 %s214, %s215
        %s217 = scalar_lea.vmem %s1, %s216
        %p218 = pneg %p83
        %p219 = pneg %p80
        %p220 = pneg %p104
        %p221 = pneg %p101
        %p222 = pneg %p132
        %p223 = pneg %p129
        %s224 = sand.u32 %s119, 1
        %s225 = scalar_lea.sflag [#allocation4], %s224
        %s226 = sand.u32 %s119, 1
        %s227 = smul.addr %s226, 2
        %s228 = scalar_lea.vmem [#allocation5], %s227
        %s229 = smul.u32 2, %s25
        %s230 = smul.u32 2, %s25
        %p231 = scmp.lt.s32.totalorder %s24, 1
        %s232 = scalar_select %p231, %s24, 1
        %p233 = scmp.lt.s32.totalorder %s230, 1
        %s234 = scalar_select %p233, %s230, 1
        %s235 = smul.addr %s232, 2
        %s236 = sadd.s32 %s234, %s235
        %s237 = scalar_lea.vmem %s1, %s236
        %s238 = smul.u32 2, %s25
        %v239 = vld [vmem:[%s198] sm:$0xff]
        %v240 = vld [vmem:[%s237] sm:$0x3]
        %vm241 = vcmp.ge.s32.totalorder %v240, 0
        %vm242 = vcmp.ne.s32.totalorder %v240, 255
        %vm243 = vmand %vm241, %vm242
        %v245 = vcombine.high %v239, %v239
        %vm247 = vcmask 1043456
        %v248 = vsel %vm247, %v239, -inf
        %v249 = vrot.slane %v248, 4
        %v250 = vmax.f32 %v248, %v249
        %v251 = vrot.slane %v250, 2
        %v252 = vmax.f32 %v250, %v251
        %v253 = vrot.slane %v252, 1
        %v254 = vmax.f32 %v252, %v253
        %v255 = vsel %vm247, %v245, -inf
        %v256 = vrot.slane %v255, 4
        %v257 = vmax.f32 %v255, %v256
        %v258 = vrot.slane %v257, 2
        %v259 = vmax.f32 %v257, %v258
        %v260 = vrot.slane %v259, 1
        %v261 = vmax.f32 %v259, %v260
        %v264 = vcombine.low %v254, %v261
        %v266 = vsub.f32 %v239, %v264
        %v267 = vmul.f32 %v266, 1.442695
        %v268 = vpow.pop %v267
        %v270 = vcombine.high %v268, %v268
        %v272 = vsel %vm247, %v268, 0.0
        %v273 = vrot.slane %v272, 4
        %v274 = vadd.f32 %v272, %v273
        %v275 = vrot.slane %v274, 2
        %v276 = vadd.f32 %v274, %v275
        %v277 = vrot.slane %v276, 1
        %v278 = vadd.f32 %v276, %v277
        %v279 = vsel %vm247, %v270, 0.0
        %v280 = vrot.slane %v279, 4
        %v281 = vadd.f32 %v279, %v280
        %v282 = vrot.slane %v281, 2
        %v283 = vadd.f32 %v281, %v282
        %v284 = vrot.slane %v283, 1
        %v285 = vadd.f32 %v283, %v284
        %v286 = vlog2.pop %v278
        %v287 = vmul.f32 %v286, 0.6931472
        %v288 = vlog2.pop %v285
        %v289 = vmul.f32 %v288, 0.6931472
        %v290 = vadd.f32 %v287, %v254
        %v291 = vadd.f32 %v289, %v261
        %v292 = vlaneseq
        %v293 = vshrl.u32 %v292, 7
        %v294 = vlaneseq
        %v295 = vshrl.u32 %v294, 7
        %v296 = vsub.s32 0, %v295
        %v297 = vrot.slane %v240, %v296
        %v298 = vlaneseq
        %v299 = vshrl.u32 %v298, 7
        %v300 = vsub.s32 1, %v299
        %v301 = vrot.slane %v240, %v300
        %vm302 = vcmp.eq.s32.totalorder %v293, %v297
        %vm303 = vcmp.eq.s32.totalorder %v293, %v301
        %v304 = vsel %vm302, %v239, 0.0
        %v305 = vsel %vm303, %v245, 0.0
        %v306 = vsel %vm247, %v304, 0.0
        %v307 = vrot.slane %v306, 4
        %v308 = vadd.f32 %v306, %v307
        %v309 = vrot.slane %v308, 2
        %v310 = vadd.f32 %v308, %v309
        %v311 = vrot.slane %v310, 1
        %v312 = vadd.f32 %v310, %v311
        %v313 = vsel %vm247, %v305, 0.0
        %v314 = vrot.slane %v313, 4
        %v315 = vadd.f32 %v313, %v314
        %v316 = vrot.slane %v315, 2
        %v317 = vadd.f32 %v315, %v316
        %v318 = vrot.slane %v317, 1
        %v319 = vadd.f32 %v317, %v318
        %v320 = vld [vmem:[%s2] sm:$0xf]
        %322 = vset.pattern.permute.xlu0 0
        %323 = vperm.xlu0 %322, %v320
        %v324 = vpop.permute.xlu0 %323
        %v326 = vsel %vm302, %v324, 0.0
        %v327 = vsel %vm303, %v324, 0.0
        %v328 = vsel %vm247, %v326, 0.0
        %v329 = vrot.slane %v328, 4
        %v330 = vadd.f32 %v328, %v329
        %v331 = vrot.slane %v330, 2
        %v332 = vadd.f32 %v330, %v331
        %v333 = vrot.slane %v332, 1
        %v334 = vadd.f32 %v332, %v333
        %v335 = vsel %vm247, %v327, 0.0
        %v336 = vrot.slane %v335, 4
        %v337 = vadd.f32 %v335, %v336
        %v338 = vrot.slane %v337, 2
        %v339 = vadd.f32 %v337, %v338
        %v340 = vrot.slane %v339, 1
        %v341 = vadd.f32 %v339, %v340
        %v342 = vsub.f32 %v290, %v312
        %v343 = vsub.f32 %v291, %v319
        %v344 = vmul.f32 %v342, %v334
        %v345 = vmul.f32 %v343, %v341
        %v348 = vcombine.low %v344, %v345
        %v350 = vunpack.c.l.s4 1966171168
        %v351 = vunpack.c.0.s8 %v350
        %v352 = vlaneseq
        %v353 = vshrl.u32 %v352, 7
        %v354 = vsub.s32 %v351, %v353
        %v355 = vrot.slane %v348, %v354
        %v357 = vunpack.c.l.s4 1966171168
        %v358 = vunpack.c.0.s8 %v357
        %v359 = vlaneseq
        %v360 = vshrl.u32 %v359, 7
        %v361 = vsub.s32 %v358, %v360
        %v362 = vrot.slane %v355, %v361
        %v364 = vsel %vm243, %v362, 0.0
        %v366 = vlaneseq
        %v367 = vshrl.u32 %v366, 7
        %v368 = vsub.s32 0, %v367
        %v369 = vrot.slane %v364, %v368
        %v370 = vlaneseq
        %v371 = vshrl.u32 %v370, 7
        %v372 = vsub.s32 1, %v371
        %v373 = vrot.slane %v364, %v372
        %vm376 = vcmask 1040384
        %v377 = vsel %vm376, %v369, 0.0
        %v378 = vsel %vm376, %v373, 0.0
        %v379 = vadd.f32 %v377, %v378
        %380 = vadd.xlane.f32.xlu0 %v379
        %v381 = vpop.xlane.xlu0 %380
        %v382 = vrot.slane %v381, 4
        %v383 = vadd.f32 %v381, %v382
        %v384 = vrot.slane %v383, 2
        %v385 = vadd.f32 %v383, %v384
        %v386 = vrot.slane %v385, 1
        %v387 = vadd.f32 %v385, %v386
        %s388 = vtos %v387
        %v391 = vcombine.low %v334, %v341
        %v393 = vunpack.c.l.s4 1966171168
        %v394 = vunpack.c.0.s8 %v393
        %v395 = vlaneseq
        %v396 = vshrl.u32 %v395, 7
        %v397 = vsub.s32 %v394, %v396
        %v398 = vrot.slane %v391, %v397
        %v400 = vunpack.c.l.s4 1966171168
        %v401 = vunpack.c.0.s8 %v400
        %v402 = vlaneseq
        %v403 = vshrl.u32 %v402, 7
        %v404 = vsub.s32 %v401, %v403
        %v405 = vrot.slane %v398, %v404
        %v407 = vsel %vm243, %v405, 0.0
        %v409 = vlaneseq
        %v410 = vshrl.u32 %v409, 7
        %v411 = vsub.s32 0, %v410
        %v412 = vrot.slane %v407, %v411
        %v413 = vlaneseq
        %v414 = vshrl.u32 %v413, 7
        %v415 = vsub.s32 1, %v414
        %v416 = vrot.slane %v407, %v415
        %v419 = vsel %vm376, %v412, 0.0
        %v420 = vsel %vm376, %v416, 0.0
        %v421 = vadd.f32 %v419, %v420
        %422 = vadd.xlane.f32.xlu0 %v421
        %v423 = vpop.xlane.xlu0 %422
        %v424 = vrot.slane %v423, 4
        %v425 = vadd.f32 %v423, %v424
        %v426 = vrot.slane %v425, 2
        %v427 = vadd.f32 %v425, %v426
        %v428 = vrot.slane %v427, 1
        %v429 = vadd.f32 %v427, %v428
        %s430 = vtos %v429
        %v431 = vlaneseq
        %v432 = vand.u32 %v431, 127
        %vm433 = vcmp.eq.s32.totalorder %v293, 0
        %v434 = vstv %s388
        %v435 = vstv %s430
        %v436 = vsel %vm433, %v434, %v435
        %vm437 = vcmp.eq.s32.totalorder %v432, 0
        %v438 = vsel %vm437, %v436, 0.0
        %439 = vst [vmem:[%s228] sm:$0x3] %v438
        %s440 = sand.u32 %s119, 1
        %s441 = scalar_lea.sflag [#allocation4], %s440
        %s442 = sand.u32 %s119, 1
        %s443 = smul.addr %s442, 2
        %s444 = scalar_lea.vmem [#allocation5], %s443
        // Predicated region
        $region37: #{tpu_custom_call.1} parent=31 // pred_check
          %p445 = pneg %p129
        $region38: #{tpu_custom_call.1} parent=31 // pred_check_branch
          %447 = sbr.rel (%p445) target = $region40
        $region39: #{tpu_custom_call.1} parent=31 // pred_region
          %s449 = ssub.s32 32, 32
          %450 = vsyncadd %s441, %s449
          %s451 = sadd.s32 %s25, %s24
          %s452 = smul.addr %s451, 32
          %s453 = scalar_lea.hbm %s3, %s452
          %s455 = sshll.u32 %s444, 4
          %s456 = int_to_ptr.vmem [resolvable:$true] %s455
          %458 = dma.vmem_to_hbm [thread:$0]  %s456, 32, %s453, %s441
        $region40: #{tpu_custom_call.1} parent=31 // pred_fallthru
          _
      $region32: #{tpu_custom_call.1} parent=5 // pred_fallthru
        _
      %p459 = scmp.le.s32.totalorder 2, %s15
      // Predicated region
      $region41: #{tpu_custom_call.1} parent=5 // pred_check
        %p460 = pneg %p459
      $region42: #{tpu_custom_call.1} parent=5 // pred_check_branch
        %462 = sbr.rel (%p460) target = $region44
      $region43: #{tpu_custom_call.1} parent=5 // pred_region
        %s463 = ssub.s32 %s15, 2
        // Predicated region
        $region45: #{tpu_custom_call.1} parent=43 // pred_check
          %p464 = pneg %p135
        $region46: #{tpu_custom_call.1} parent=43 // pred_check_branch
          %466 = sbr.rel (%p464) target = $region48
        $region47: #{tpu_custom_call.1} parent=43 // pred_region
          %s467 = sand.u32 %s120, 1
          %s468 = scalar_lea.sflag [#allocation4], %s467
          %s469 = sand.u32 %s120, 1
          %s470 = smul.addr %s469, 2
          %s471 = scalar_lea.vmem [#allocation5], %s470
          %472 = dma.done %s468, 32
        $region48: #{tpu_custom_call.1} parent=43 // pred_fallthru
          _
      $region44: #{tpu_custom_call.1} parent=5 // pred_fallthru
        _
    $region6: #{tpu_custom_call.1} parent=1 // loop_footer
      %s19 = sadd.s32 1, %s15
    $region7: #{tpu_custom_call.1} parent=1 // loop_footer_branch
      %14 = sbr.rel target = $region3
    $region8: #{tpu_custom_call.1} parent=1 // loop_exit
      _
    %473 = vsyncpa [#allocation3], 1
    %s474 = scalar_lea.sflag [#allocation3], 1
    %475 = vsyncpa %s474, 1
    %476 = vsyncpa [#allocation4], 1
    %s477 = scalar_lea.sflag [#allocation4], 1
    %478 = vsyncpa %s477, 1

</llo_original>
